<compile_context>
chip_gen: v7x
topology: tpu7x:2x2x1
jax: 0.10.0
libtpu: 0.0.40
codegen_flags: <defaults>
</compile_context>

<pallas_src>
import functools

import jax
import jax.numpy as jnp
from jax import lax
from jax.experimental import pallas as pl
from jax.experimental.pallas import tpu as pltpu


def spatial_attn_kernel(x_ref, w_ref, b_ref, g_ref,      # inputs
                        out_ref, attn_ref,               # outputs
                        q_scr, k_scr, v_scr,             # VMEM scratch
                        *, Cq, C, N, N_pad, TQ):
    qi = pl.program_id(1)

    # ---- Once per batch element: fused q/k/v projection into VMEM scratch. ----
    @pl.when(qi == 0)
    def _():
        x_t = x_ref[0]                                            # (N_pad, C) f32
        qkv = jnp.dot(x_t, w_ref[...],
                      preferred_element_type=jnp.float32) + b_ref[...]  # (N_pad, 2Cq+C)
        q_scr[...] = qkv[:, :Cq].astype(jnp.bfloat16)             # (N_pad, Cq)
        # Only the thin k slice is transposed (once per batch) so the per-step
        # energy matmul is an ideal (last, first) contraction.
        k_scr[...] = jnp.transpose(qkv[:, Cq:2 * Cq]).astype(jnp.bfloat16)  # (Cq, N_pad)
        v_scr[...] = qkv[:, 2 * Cq:].astype(jnp.bfloat16)         # (N_pad, C)

    row0 = pl.multiple_of(qi * TQ, TQ)

    # energy[n, m] = sum_c q[n, c] * k[c, m]   -> (TQ, N_pad), f32 accumulation.
    q_tile = q_scr[pl.ds(row0, TQ), :]                            # (TQ, Cq) bf16
    energy = jnp.dot(q_tile, k_scr[...], preferred_element_type=jnp.float32)

    if N_pad != N:  # mask padded key columns before the softmax
        col = lax.broadcasted_iota(jnp.int32, (TQ, N_pad), 1)
        energy = jnp.where(col < N, energy, jnp.float32(-1e30))

    # Row softmax (each row's full key range is present in the tile).
    e_max = jnp.max(energy, axis=-1, keepdims=True)
    p = jnp.exp(energy - e_max)
    attn = p * pl.reciprocal(jnp.sum(p, axis=-1, keepdims=True), approx=True)

    attn_ref[0] = attn.astype(attn_ref.dtype)                     # (TQ, N_pad)

    # out[n, c] = sum_m attn[n, m] * v[m, c]   -> (TQ, C)
    pv = jnp.dot(attn.astype(jnp.bfloat16), v_scr[...],
                 preferred_element_type=jnp.float32)

    # Residual + gamma in (TQ, C), then one small transpose for a lane-dense
    # (C, TQ) store (lane dim = TQ, multiple of 128).
    x_tile = x_ref[0, pl.ds(row0, TQ), :]                         # (TQ, C) f32
    out_nc = g_ref[0] * pv + x_tile
    out_ref[0] = jnp.transpose(out_nc).astype(out_ref.dtype)      # (C, TQ)


def spatial_attn(x, wq, bq, wk, bk, wv, bv, gamma, *, tq=None):
    """x: [B, C, W, H]. Returns (out [B,C,W,H], attention [B,N,N]), N = W*H."""
    B, C, W, H = x.shape
    N = W * H
    Cq = wq.shape[0]
    Ctot = 2 * Cq + C

    # Pad spatial positions up to a multiple of 128 (lane-dense blocks).
    N_pad = ((N + 127) // 128) * 128
    if tq is None:
        tq = 256 if N_pad % 256 == 0 else 128
    tq = min(tq, N_pad)
    assert N_pad % tq == 0
    n_q_tiles = N_pad // tq

    x_flat = x.reshape(B, C, N)
    if N_pad != N:
        x_flat = jnp.pad(x_flat, ((0, 0), (0, 0), (0, N_pad - N)))
    # Kernel works on x^T = (B, N_pad, C): projections become (N, C) @ (C, Ctot).
    x_t = jnp.transpose(x_flat, (0, 2, 1))

    # Fuse the three 1x1-conv weights into one (C, 2Cq+C) matmul operand.
    w_all_t = jnp.transpose(jnp.concatenate([wq, wk, wv], axis=0))     # (C, Ctot)
    b_all = jnp.concatenate([bq, bk, bv], axis=0).reshape(1, Ctot)      # (1, Ctot)
    gamma_s = gamma.reshape((1,)).astype(jnp.float32)

    kernel = functools.partial(spatial_attn_kernel,
                               Cq=Cq, C=C, N=N, N_pad=N_pad, TQ=tq)

    out_cn, attn = pl.pallas_call(
        kernel,
        out_shape=(jax.ShapeDtypeStruct((B, C, N_pad), x.dtype),
                   jax.ShapeDtypeStruct((B, N_pad, N_pad), jnp.float32)),
        grid_spec=pltpu.PrefetchScalarGridSpec(
            num_scalar_prefetch=0,
            grid=(B, n_q_tiles),
            in_specs=[
                pl.BlockSpec((1, N_pad, C), lambda b, q: (b, 0, 0)),   # x^T slab (resident per batch)
                pl.BlockSpec((C, Ctot), lambda b, q: (0, 0)),          # fused W^T
                pl.BlockSpec((1, Ctot), lambda b, q: (0, 0)),          # fused bias
                pl.BlockSpec(memory_space=pltpu.MemorySpace.SMEM),     # gamma scalar
            ],
            out_specs=[
                pl.BlockSpec((1, C, tq), lambda b, q: (b, 0, q)),      # out (C-major, lane-dense)
                pl.BlockSpec((1, tq, N_pad), lambda b, q: (b, q, 0)),  # attention rows
            ],
            scratch_shapes=[
                pltpu.VMEM((N_pad, Cq), jnp.bfloat16),   # q (all positions)
                pltpu.VMEM((Cq, N_pad), jnp.bfloat16),   # k (transposed)
                pltpu.VMEM((N_pad, C), jnp.bfloat16),    # v
            ],
        ),
        compiler_params=pltpu.CompilerParams(
            dimension_semantics=("parallel", "arbitrary"),
            vmem_limit_bytes=64 * 1024 * 1024,
        ),
    )(x_t, w_all_t, b_all, gamma_s)

    out = out_cn[:, :, :N].reshape(B, C, W, H)
    attn = attn[:, :N, :N]
    return out, attn


def spatial_attn_ref(x, wq, bq, wk, bk, wv, bv, gamma):
    """Pure-JAX reference matching the PyTorch forward pass (f32 math)."""
    B, C, W, H = x.shape
    N = W * H
    xf = x.reshape(B, C, N)
    q = jnp.einsum('oc,bcn->bon', wq, xf) + bq[None, :, None]
    k = jnp.einsum('oc,bcn->bon', wk, xf) + bk[None, :, None]
    v = jnp.einsum('oc,bcn->bon', wv, xf) + bv[None, :, None]
    energy = jnp.einsum('bcn,bcm->bnm', q, k)
    attn = jax.nn.softmax(energy, axis=-1)
    out = jnp.einsum('bcm,bnm->bcn', v, attn)
    out = gamma[0] * out + xf
    return out.reshape(B, C, W, H), attn


if __name__ == "__main__":
    # Shapes consistent with the module: in_dim == 16 -> out_dim = 8.
    B, C, W, H = 2, 16, 8, 8
    Cq = C // 2

    key = jax.random.PRNGKey(0)
    kx, kq, kbq, kk, kbk, kv, kbv = jax.random.split(key, 7)

    x = jax.random.normal(kx, (B, C, W, H), dtype=jnp.float32)
    # Conv2d weights [out_ch, in_ch, 1, 1] flattened to [out_ch, in_ch].
    wq = jax.random.normal(kq, (Cq, C), dtype=jnp.float32) * 0.1
    bq = jax.random.normal(kbq, (Cq,), dtype=jnp.float32) * 0.1
    wk = jax.random.normal(kk, (Cq, C), dtype=jnp.float32) * 0.1
    bk = jax.random.normal(kbk, (Cq,), dtype=jnp.float32) * 0.1
    wv = jax.random.normal(kv, (C, C), dtype=jnp.float32) * 0.1
    bv = jax.random.normal(kbv, (C,), dtype=jnp.float32) * 0.1
    # PyTorch initializes gamma to zero; use a nonzero value so the attention
    # path actually contributes to the checked output.
    gamma = jnp.array([0.5], dtype=jnp.float32)

    out, attn = spatial_attn(x, wq, bq, wk, bk, wv, bv, gamma)
    jax.block_until_ready((out, attn))

    out_ref, attn_ref = spatial_attn_ref(x, wq, bq, wk, bk, wv, bv, gamma)
    # Tolerances loosened vs. the pure-f32 version: the kernel feeds the MXU with
    # bf16 operands (f32 accumulation) and uses the approx EUP reciprocal.
    assert jnp.allclose(out, out_ref, atol=1e-2, rtol=1e-2), "out mismatch"
    assert jnp.allclose(attn, attn_ref, atol=2e-3, rtol=1e-2), "attention mismatch"

    print("KERNEL_OK")
</pallas_src>

<mosaic_0001>
module attributes {stable_mosaic.version = 11 : i64} {
  func.func @spatial_attn_kernel(%arg0: i32, %arg1: i32, %arg2: memref<1x128x16xf32, #tpu.memory_space<vmem>>, %arg3: memref<16x32xf32, #tpu.memory_space<vmem>>, %arg4: memref<1x32xf32, #tpu.memory_space<vmem>>, %arg5: memref<1xf32, #tpu.memory_space<smem>>, %arg6: memref<1x16x128xf32, #tpu.memory_space<vmem>>, %arg7: memref<1x128x128xf32, #tpu.memory_space<vmem>>, %arg8: memref<128x8xbf16, #tpu.memory_space<vmem>>, %arg9: memref<8x128xbf16, #tpu.memory_space<vmem>>, %arg10: memref<128x16xbf16, #tpu.memory_space<vmem>>) attributes {dimension_semantics = [#tpu.dimension_semantics<parallel>, #tpu.dimension_semantics<arbitrary>], iteration_bounds = array<i64: 2, 1>, scalar_prefetch = 0 : i64, scratch_operands = 3 : i64, tpu.core_type = #tpu.core_type<tc>, window_params = [{transform_indices = @transform_0, window_bounds = array<i64: 1, 128, 16>}, {pipeline_mode = #tpu.pipeline_mode<synchronous>, transform_indices = @transform_1, window_bounds = array<i64: 16, 32>}, {pipeline_mode = #tpu.pipeline_mode<synchronous>, transform_indices = @transform_2, window_bounds = array<i64: 1, 32>}, {transform_indices = @transform_3, window_bounds = array<i64: 1>}, {transform_indices = @transform_4, window_bounds = array<i64: 1, 16, 128>}, {transform_indices = @transform_5, window_bounds = array<i64: 1, 128, 128>}]} {
    %c0_i32 = arith.constant 0 : i32
    %0 = arith.cmpi eq, %arg1, %c0_i32 : i32
    %1 = arith.extui %0 : i1 to i32
    %c0_i32_0 = arith.constant 0 : i32
    %2 = arith.cmpi ne, %1, %c0_i32_0 : i32
    scf.if %2 {
      %c0_18 = arith.constant 0 : index
      %c0_19 = arith.constant 0 : index
      %c0_20 = arith.constant 0 : index
      %41 = vector.load %arg2[%c0_18, %c0_19, %c0_20] : memref<1x128x16xf32, #tpu.memory_space<vmem>>, vector<1x128x16xf32>
      %42 = vector.shape_cast %41 : vector<1x128x16xf32> to vector<128x16xf32>
      %c0_21 = arith.constant 0 : index
      %c0_22 = arith.constant 0 : index
      %43 = vector.load %arg3[%c0_21, %c0_22] : memref<16x32xf32, #tpu.memory_space<vmem>>, vector<16x32xf32>
      %cst_23 = arith.constant dense<0.000000e+00> : vector<128x32xf32>
      %44 = tpu.matmul %42, %43, %cst_23 {dimension_numbers = #tpu.dot_dimension_numbers<[1], [0], [0], [1], [0, 0, 1, 1], [], []>} : vector<128x16xf32>, vector<16x32xf32>, vector<128x32xf32> -> vector<128x32xf32>
      %c0_24 = arith.constant 0 : index
      %c0_25 = arith.constant 0 : index
      %45 = vector.load %arg4[%c0_24, %c0_25] : memref<1x32xf32, #tpu.memory_space<vmem>>, vector<1x32xf32>
      %46 = vector.broadcast %45 : vector<1x32xf32> to vector<128x32xf32>
      %47 = arith.addf %44, %46 : vector<128x32xf32>
      %48 = vector.extract_strided_slice %47 {offsets = [0, 0], sizes = [128, 8], strides = [1, 1]} : vector<128x32xf32> to vector<128x8xf32>
      %49 = arith.truncf %48 : vector<128x8xf32> to vector<128x8xbf16>
      %c0_26 = arith.constant 0 : index
      %c0_27 = arith.constant 0 : index
      %50 = vector.load %arg8[%c0_26, %c0_27] : memref<128x8xbf16, #tpu.memory_space<vmem>>, vector<128x8xbf16>
      tpu.vector_store %arg8[%c0_26, %c0_27], %49 {strides = array<i32>} : memref<128x8xbf16, #tpu.memory_space<vmem>>, vector<128x8xbf16>,
      %51 = vector.extract_strided_slice %47 {offsets = [0, 8], sizes = [128, 8], strides = [1, 1]} : vector<128x32xf32> to vector<128x8xf32>
      %52 = tpu.transpose %51, [1, 0] : vector<128x8xf32> -> vector<8x128xf32>
      %53 = arith.truncf %52 : vector<8x128xf32> to vector<8x128xbf16>
      %c0_28 = arith.constant 0 : index
      %c0_29 = arith.constant 0 : index
      %54 = vector.load %arg9[%c0_28, %c0_29] : memref<8x128xbf16, #tpu.memory_space<vmem>>, vector<8x128xbf16>
      tpu.vector_store %arg9[%c0_28, %c0_29], %53 {strides = array<i32>} : memref<8x128xbf16, #tpu.memory_space<vmem>>, vector<8x128xbf16>,
      %55 = vector.extract_strided_slice %47 {offsets = [0, 16], sizes = [128, 16], strides = [1, 1]} : vector<128x32xf32> to vector<128x16xf32>
      %56 = arith.truncf %55 : vector<128x16xf32> to vector<128x16xbf16>
      %c0_30 = arith.constant 0 : index
      %c0_31 = arith.constant 0 : index
      %57 = vector.load %arg10[%c0_30, %c0_31] : memref<128x16xbf16, #tpu.memory_space<vmem>>, vector<128x16xbf16>
      tpu.vector_store %arg10[%c0_30, %c0_31], %56 {strides = array<i32>} : memref<128x16xbf16, #tpu.memory_space<vmem>>, vector<128x16xbf16>,
    } else {
    }
    %c128_i32 = arith.constant 128 : i32
    %3 = arith.muli %arg1, %c128_i32 : i32
    %4 = tpu.assume_multiple %3, 128 : i32
    %5 = arith.index_cast %4 : i32 to index
    %c0 = arith.constant 0 : index
    %6 = vector.load %arg8[%5, %c0] : memref<128x8xbf16, #tpu.memory_space<vmem>>, vector<128x8xbf16>
    %c0_1 = arith.constant 0 : index
    %c0_2 = arith.constant 0 : index
    %7 = vector.load %arg9[%c0_1, %c0_2] : memref<8x128xbf16, #tpu.memory_space<vmem>>, vector<8x128xbf16>
    %cst = arith.constant dense<0.000000e+00> : vector<128x128xf32>
    %8 = tpu.matmul %6, %7, %cst {dimension_numbers = #tpu.dot_dimension_numbers<[1], [0], [0], [1], [0, 0, 1, 1], [], []>} : vector<128x8xbf16>, vector<8x128xbf16>, vector<128x128xf32> -> vector<128x128xf32>
    %9 = tpu.iota {dimensions = array<i32: 1>} : vector<128x128xi32>
    %c64_i32 = arith.constant 64 : i32
    %10 = vector.broadcast %c64_i32 : i32 to vector<128x128xi32>
    %11 = arith.cmpi slt, %9, %10 : vector<128x128xi32>
    %cst_3 = arith.constant -1.000000e+30 : f32
    %12 = vector.broadcast %cst_3 : f32 to vector<128x128xf32>
    %13 = arith.select %11, %8, %12 : vector<128x128xi1>, vector<128x128xf32>
    %cst_4 = arith.constant dense<0xFF800000> : vector<128xf32>
    %14 = vector.multi_reduction <maximumf>, %13, %cst_4 [1] : vector<128x128xf32> to vector<128xf32>
    %15 = vector.shape_cast %14 : vector<128xf32> to vector<128x1xf32>
    %16 = vector.broadcast %15 : vector<128x1xf32> to vector<128x128xf32>
    %17 = arith.subf %13, %16 : vector<128x128xf32>
    %18 = math.exp %17 : vector<128x128xf32>
    %cst_5 = arith.constant dense<0.000000e+00> : vector<128xf32>
    %19 = vector.multi_reduction <add>, %18, %cst_5 [1] : vector<128x128xf32> to vector<128xf32>
    %20 = vector.shape_cast %19 : vector<128xf32> to vector<128x1xf32>
    %21 = tpu.reciprocal %20 {approx = true} : vector<128x1xf32> -> vector<128x1xf32>
    %22 = vector.broadcast %21 : vector<128x1xf32> to vector<128x128xf32>
    %23 = arith.mulf %18, %22 : vector<128x128xf32>
    %c0_6 = arith.constant 0 : index
    %c0_7 = arith.constant 0 : index
    %c0_8 = arith.constant 0 : index
    %24 = vector.load %arg7[%c0_6, %c0_7, %c0_8] : memref<1x128x128xf32, #tpu.memory_space<vmem>>, vector<1x128x128xf32>
    %25 = vector.shape_cast %24 : vector<1x128x128xf32> to vector<128x128xf32>
    %26 = vector.shape_cast %23 : vector<128x128xf32> to vector<1x128x128xf32>
    tpu.vector_store %arg7[%c0_6, %c0_7, %c0_8], %26 {strides = array<i32>} : memref<1x128x128xf32, #tpu.memory_space<vmem>>, vector<1x128x128xf32>,
    %27 = arith.truncf %23 : vector<128x128xf32> to vector<128x128xbf16>
    %c0_9 = arith.constant 0 : index
    %c0_10 = arith.constant 0 : index
    %28 = vector.load %arg10[%c0_9, %c0_10] : memref<128x16xbf16, #tpu.memory_space<vmem>>, vector<128x16xbf16>
    %cst_11 = arith.constant dense<0.000000e+00> : vector<128x16xf32>
    %29 = tpu.matmul %27, %28, %cst_11 {dimension_numbers = #tpu.dot_dimension_numbers<[1], [0], [0], [1], [0, 0, 1, 1], [], []>} : vector<128x128xbf16>, vector<128x16xbf16>, vector<128x16xf32> -> vector<128x16xf32>
    %c0_12 = arith.constant 0 : index
    %30 = arith.index_cast %4 : i32 to index
    %c0_13 = arith.constant 0 : index
    %31 = vector.load %arg2[%c0_12, %30, %c0_13] : memref<1x128x16xf32, #tpu.memory_space<vmem>>, vector<1x128x16xf32>
    %32 = vector.shape_cast %31 : vector<1x128x16xf32> to vector<128x16xf32>
    %c0_14 = arith.constant 0 : index
    %33 = memref.load %arg5[%c0_14] : memref<1xf32, #tpu.memory_space<smem>>
    %34 = vector.broadcast %33 : f32 to vector<128x16xf32>
    %35 = arith.mulf %34, %29 : vector<128x16xf32>
    %36 = arith.addf %35, %32 : vector<128x16xf32>
    %37 = tpu.transpose %36, [1, 0] : vector<128x16xf32> -> vector<16x128xf32>
    %c0_15 = arith.constant 0 : index
    %c0_16 = arith.constant 0 : index
    %c0_17 = arith.constant 0 : index
    %38 = vector.load %arg6[%c0_15, %c0_16, %c0_17] : memref<1x16x128xf32, #tpu.memory_space<vmem>>, vector<1x16x128xf32>
    %39 = vector.shape_cast %38 : vector<1x16x128xf32> to vector<16x128xf32>
    %40 = vector.shape_cast %37 : vector<16x128xf32> to vector<1x16x128xf32>
    tpu.vector_store %arg6[%c0_15, %c0_16, %c0_17], %40 {strides = array<i32>} : memref<1x16x128xf32, #tpu.memory_space<vmem>>, vector<1x16x128xf32>,
    return
  }
  func.func @transform_0(%arg0: i32, %arg1: i32) -> (i32, i32, i32) {
    %c0_i32 = arith.constant 0 : i32
    %c0_i32_0 = arith.constant 0 : i32
    %c0_i32_1 = arith.constant 0 : i32
    return %arg0, %c0_i32, %c0_i32_0 : i32, i32, i32
  }
  func.func @transform_1(%arg0: i32, %arg1: i32) -> (i32, i32) {
    %c0_i32 = arith.constant 0 : i32
    %c0_i32_0 = arith.constant 0 : i32
    %c0_i32_1 = arith.constant 0 : i32
    return %c0_i32, %c0_i32_0 : i32, i32
  }
  func.func @transform_2(%arg0: i32, %arg1: i32) -> (i32, i32) {
    %c0_i32 = arith.constant 0 : i32
    %c0_i32_0 = arith.constant 0 : i32
    %c0_i32_1 = arith.constant 0 : i32
    return %c0_i32, %c0_i32_0 : i32, i32
  }
  func.func @transform_3(%arg0: i32, %arg1: i32) -> i32 {
    %c0_i32 = arith.constant 0 : i32
    %c0_i32_0 = arith.constant 0 : i32
    return %c0_i32 : i32
  }
  func.func @transform_4(%arg0: i32, %arg1: i32) -> (i32, i32, i32) {
    %c0_i32 = arith.constant 0 : i32
    %c0_i32_0 = arith.constant 0 : i32
    return %arg0, %c0_i32, %arg1 : i32, i32, i32
  }
  func.func @transform_5(%arg0: i32, %arg1: i32) -> (i32, i32, i32) {
    %c0_i32 = arith.constant 0 : i32
    %c0_i32_0 = arith.constant 0 : i32
    return %arg0, %arg1, %c0_i32 : i32, i32, i32
  }
}

</mosaic_0001>

<llo_original>
// kernel: tpu_custom_call.1
$region0: #{tpu_custom_call.1}
  #allocation0 [shape = 'u32[]', space=smem, size = 0x4, offset = 0x4, fixed_abs, tag = 'smem constant byte address 0x4 - core index']
  #allocation1 [shape = 'u32[144,128]{1,0:T(1,128)}', space=vmem, size = 0x12000, scoped, tag = 'internal scratch']
  #allocation2 [shape = 'bf16[128,8]{1,0:T(16,128)(2,1)}', space=vmem, size = 0x8000, scoped, tag = 'scratch operand']
  #allocation3 [shape = 'bf16[8,128]{1,0:T(8,128)(2,1)}', space=vmem, size = 0x800, scoped, tag = 'scratch operand']
  #allocation4 [shape = 'bf16[128,16]{1,0:T(16,128)(2,1)}', space=vmem, size = 0x8000, scoped, tag = 'scratch operand']
  #allocation5 [shape = 'f32[1]{0:T(128)S(6)}', space=smem, size = 0x200, scoped, tag = 'scoped memory for tpu_custom_call.1']
  %s0 = inlined_call_operand.hbm [shape: f32[2,128,16], index: 0, kind: input, shape index: {}]
  %s1 = inlined_call_operand.hbm [shape: f32[16,32], index: 1, kind: input, shape index: {}]
  %s2 = inlined_call_operand.hbm [shape: f32[1,32], index: 2, kind: input, shape index: {}]
  %s3 = inlined_call_operand.<no memory space> [shape: f32[1], index: 3, kind: input, shape index: {}]
  %s4 = inlined_call_operand.hbm [shape: f32[2,16,128], index: 4, kind: output, shape index: {0}]
  %s5 = inlined_call_operand.hbm [shape: f32[2,128,128], index: 5, kind: output, shape index: {1}]
  %6 = xla_tuple %s4, %s5
  %s7 = sld [smem:[#allocation0]]
  $region73: #{tpu_custom_call.1} parent=0
    _
  %s9 = ssub.s32 1, %s7
  %s10 = scalar_select 0, %s9, %s7
  %11 = sst [smem:[#allocation5]] %s3
  $region1: #{tpu_custom_call.1} parent=0
    #allocation6 [shape = 'u8[131072]{0}', space=vmem, size = 0x20000, scoped, tag = 'input window, operand 0']
    #allocation7 [shape = 's32[2]{0}', space=sflag, size = 0x8, scoped, tag = 'scoped memory for tpu_custom_call.1']
    #allocation8 [shape = 's32[2]{0}', space=sflag, size = 0x8, scoped, tag = 'scoped memory for tpu_custom_call.1']
    #allocation9 [shape = 'u8[8192]{0}', space=vmem, size = 0x2000, scoped, tag = 'input window, operand 1, single buffered']
    #allocation10 [shape = 's32[1]{0}', space=sflag, size = 0x4, scoped, tag = 'scoped memory for tpu_custom_call.1']
    #allocation11 [shape = 'u8[512]{0}', space=vmem, size = 0x400, scoped, tag = 'input window, operand 2, single buffered']
    #allocation12 [shape = 'u8[16384]{0}', space=vmem, size = 0x4000, scoped, tag = 'output window, operand 0']
    #allocation13 [shape = 'u8[131072]{0}', space=vmem, size = 0x20000, scoped, tag = 'output window, operand 1']
    #allocation14 [shape = 's32[2]{0}', space=sflag, size = 0x8, scoped, tag = 'scoped memory for tpu_custom_call.1']
    %12 = vsyncpa [#allocation7], 0
    %s13 = scalar_lea.sflag [#allocation7], 1
    %14 = vsyncpa %s13, 0
    %15 = vsyncpa [#allocation10], 0
    %16 = vsyncpa [#allocation8], 0
    %s17 = scalar_lea.sflag [#allocation8], 1
    %18 = vsyncpa %s17, 0
    %19 = vsyncpa [#allocation14], 0
    %s20 = scalar_lea.sflag [#allocation14], 1
    %21 = vsyncpa %s20, 0
    loop: start=0, step=1, limit=4
    $region2: #{tpu_custom_call.1} parent=1 // loop_pre_header
      _
    $region3: #{tpu_custom_call.1} parent=1 // loop_header
      %s23 = sphi 0, %s27
      %p24 = scmp.ge.s32.totalorder %s23, 4
      %s30 = sphi 0, %s42
      %s31 = sphi 0, %s38
      %s32 = sphi 0, %s30
      %s33 = sphi 0, %s31
      %s34 = sphi 0, %s32
      %s35 = sphi 0, %s33
      %s45 = sphi 0, %s47
      %s48 = sphi 0, %s45
      %s49 = sphi 0, %s48
      %s65 = sphi 0, %s49
      %s69 = sphi 0, %s69
      %s71 = sphi 0, %s69
      %s72 = sphi 0, %s71
      %s86 = sphi 0, %s72
      %s90 = sphi 0, %s90
      %s92 = sphi 0, %s90
      %s93 = sphi 0, %s92
      %s107 = sphi 0, %s93
      %s111 = sphi 0, %s111
      %s113 = sphi 0, %s111
      %s114 = sphi 0, %s113
      %s128 = sphi 0, %s114
      %s136 = sphi 0, %s138
      %s139 = sphi 0, %s136
      %s140 = sphi 0, %s139
      %s156 = sphi 0, %s140
      %s164 = sphi 0, %s166
      %s167 = sphi 0, %s164
      %s168 = sphi 0, %s167
      %s184 = sphi 0, %s168
    $region4: #{tpu_custom_call.1} parent=1 // loop_header_branch
      %26 = sbr.rel (%p24) target = $region8
    $region5: #{tpu_custom_call.1} parent=1 // loop_body
      %s28 = ssub.s32 %s23, 1
      %s29 = ssub.s32 %s23, 2
      %s36 = sadd.s32 1, %s31
      %p37 = scmp.ge.s32.totalorder %s36, 1
      %s38 = scalar_select %p37, 0, %s36
      %s39 = sadd.s32 1, %s30
      %s40 = scalar_select %p37, %s39, %s30
      %p41 = scmp.ge.s32.totalorder %s40, 2
      %s42 = scalar_select %p41, 0, %s40
      %s43 = ssub.s32 %s30, %s42
      %p44 = scmp.eq.s32.totalorder %s43, 0
      %s46 = sadd.s32 %s45, 1
      %s47 = scalar_select %p44, %s45, %s46
      %p50 = pneg %p44
      %p51 = scmp.eq.s32.totalorder %s23, 1
      %p52 = por %p50, %p51
      %p53 = scmp.ne.s32.totalorder %s45, %s48
      %p54 = scmp.eq.s32.totalorder %s23, 0
      %p55 = por %p53, %p54
      %p56 = scmp.ne.s32.totalorder %s45, %s48
      %p57 = scmp.eq.s32.totalorder %s28, 1
      %p58 = por %p56, %p57
      %p59 = scmp.ne.s32.totalorder %s48, %s49
      %p60 = scmp.eq.s32.totalorder %s28, 0
      %p61 = por %p59, %p60
      %p62 = scmp.ne.s32.totalorder %s48, %s49
      %p63 = scmp.eq.s32.totalorder %s29, 1
      %p64 = por %p62, %p63
      %p66 = scmp.ne.s32.totalorder %s49, %s65
      %p67 = scmp.eq.s32.totalorder %s29, 0
      %p68 = por %p66, %p67
      %s70 = sadd.s32 %s69, 1
      %p73 = scmp.eq.s32.totalorder %s23, 1
      %p74 = scmp.ne.s32.totalorder %s69, %s71
      %p75 = scmp.eq.s32.totalorder %s23, 0
      %p76 = por %p74, %p75
      %p77 = scmp.ne.s32.totalorder %s69, %s71
      %p78 = scmp.eq.s32.totalorder %s28, 1
      %p79 = por %p77, %p78
      %p80 = scmp.ne.s32.totalorder %s71, %s72
      %p81 = scmp.eq.s32.totalorder %s28, 0
      %p82 = por %p80, %p81
      %p83 = scmp.ne.s32.totalorder %s71, %s72
      %p84 = scmp.eq.s32.totalorder %s29, 1
      %p85 = por %p83, %p84
      %p87 = scmp.ne.s32.totalorder %s72, %s86
      %p88 = scmp.eq.s32.totalorder %s29, 0
      %p89 = por %p87, %p88
      %s91 = sadd.s32 %s90, 1
      %p94 = scmp.eq.s32.totalorder %s23, 1
      %p95 = scmp.ne.s32.totalorder %s90, %s92
      %p96 = scmp.eq.s32.totalorder %s23, 0
      %p97 = por %p95, %p96
      %p98 = scmp.ne.s32.totalorder %s90, %s92
      %p99 = scmp.eq.s32.totalorder %s28, 1
      %p100 = por %p98, %p99
      %p101 = scmp.ne.s32.totalorder %s92, %s93
      %p102 = scmp.eq.s32.totalorder %s28, 0
      %p103 = por %p101, %p102
      %p104 = scmp.ne.s32.totalorder %s92, %s93
      %p105 = scmp.eq.s32.totalorder %s29, 1
      %p106 = por %p104, %p105
      %p108 = scmp.ne.s32.totalorder %s93, %s107
      %p109 = scmp.eq.s32.totalorder %s29, 0
      %p110 = por %p108, %p109
      %s112 = sadd.s32 %s111, 1
      %p115 = scmp.eq.s32.totalorder %s23, 1
      %p116 = scmp.ne.s32.totalorder %s111, %s113
      %p117 = scmp.eq.s32.totalorder %s23, 0
      %p118 = por %p116, %p117
      %p119 = scmp.ne.s32.totalorder %s111, %s113
      %p120 = scmp.eq.s32.totalorder %s28, 1
      %p121 = por %p119, %p120
      %p122 = scmp.ne.s32.totalorder %s113, %s114
      %p123 = scmp.eq.s32.totalorder %s28, 0
      %p124 = por %p122, %p123
      %p125 = scmp.ne.s32.totalorder %s113, %s114
      %p126 = scmp.eq.s32.totalorder %s29, 1
      %p127 = por %p125, %p126
      %p129 = scmp.ne.s32.totalorder %s114, %s128
      %p130 = scmp.eq.s32.totalorder %s29, 0
      %p131 = por %p129, %p130
      %s132 = ssub.s32 %s30, %s42
      %s133 = ssub.s32 %s31, %s38
      %s134 = sor.u32 %s132, %s133
      %p135 = scmp.eq.s32.totalorder %s134, 0
      %s137 = sadd.s32 %s136, 1
      %s138 = scalar_select %p135, %s136, %s137
      %p141 = pneg %p135
      %p142 = scmp.eq.s32.totalorder %s23, 1
      %p143 = por %p141, %p142
      %p144 = scmp.ne.s32.totalorder %s136, %s139
      %p145 = scmp.eq.s32.totalorder %s23, 0
      %p146 = por %p144, %p145
      %p147 = scmp.ne.s32.totalorder %s136, %s139
      %p148 = scmp.eq.s32.totalorder %s28, 1
      %p149 = por %p147, %p148
      %p150 = scmp.ne.s32.totalorder %s139, %s140
      %p151 = scmp.eq.s32.totalorder %s28, 0
      %p152 = por %p150, %p151
      %p153 = scmp.ne.s32.totalorder %s139, %s140
      %p154 = scmp.eq.s32.totalorder %s29, 1
      %p155 = por %p153, %p154
      %p157 = scmp.ne.s32.totalorder %s140, %s156
      %p158 = scmp.eq.s32.totalorder %s29, 0
      %p159 = por %p157, %p158
      %s160 = ssub.s32 %s30, %s42
      %s161 = ssub.s32 %s31, %s38
      %s162 = sor.u32 %s160, %s161
      %p163 = scmp.eq.s32.totalorder %s162, 0
      %s165 = sadd.s32 %s164, 1
      %s166 = scalar_select %p163, %s164, %s165
      %p169 = pneg %p163
      %p170 = scmp.eq.s32.totalorder %s23, 1
      %p171 = por %p169, %p170
      %p172 = scmp.ne.s32.totalorder %s164, %s167
      %p173 = scmp.eq.s32.totalorder %s23, 0
      %p174 = por %p172, %p173
      %p175 = scmp.ne.s32.totalorder %s164, %s167
      %p176 = scmp.eq.s32.totalorder %s28, 1
      %p177 = por %p175, %p176
      %p178 = scmp.ne.s32.totalorder %s167, %s168
      %p179 = scmp.eq.s32.totalorder %s28, 0
      %p180 = por %p178, %p179
      %p181 = scmp.ne.s32.totalorder %s167, %s168
      %p182 = scmp.eq.s32.totalorder %s29, 1
      %p183 = por %p181, %p182
      %p185 = scmp.ne.s32.totalorder %s168, %s184
      %p186 = scmp.eq.s32.totalorder %s29, 0
      %p187 = por %p185, %p186
      %p188 = scmp.le.s32.totalorder 1, %s23
      %p189 = scmp.lt.s32.totalorder %s23, 3
      %p190 = pnand %p188, %p189
      %p191 = pneg %p190
      // Predicated region
      $region9: #{tpu_custom_call.1} parent=5 // pred_check
        _
      $region10: #{tpu_custom_call.1} parent=5 // pred_check_branch
        %193 = sbr.rel (%p190) target = $region12
      $region11: #{tpu_custom_call.1} parent=5 // pred_region
        %s194 = ssub.s32 %s23, 1
        // Predicated region
        $region13: #{tpu_custom_call.1} parent=11 // pred_check
          %p195 = pneg %p82
        $region14: #{tpu_custom_call.1} parent=11 // pred_check_branch
          %197 = sbr.rel (%p195) target = $region16
        $region15: #{tpu_custom_call.1} parent=11 // pred_region
          %s199 = ssub.s32 256, 256
          %200 = vsyncadd [#allocation10], %s199
          %s201 = sshll.u32 [#allocation9], 4
          %s202 = int_to_ptr.vmem [resolvable:$true] %s201
          %207 = dma.hbm_to_vmem [thread:$0]  %s1, 256, %s202, [#allocation10], 128, 128, 8
        $region16: #{tpu_custom_call.1} parent=11 // pred_fallthru
          _
        // Predicated region
        $region17: #{tpu_custom_call.1} parent=11 // pred_check
          %p208 = pneg %p103
        $region18: #{tpu_custom_call.1} parent=11 // pred_check_branch
          %210 = sbr.rel (%p208) target = $region20
        $region19: #{tpu_custom_call.1} parent=11 // pred_region
          %s212 = ssub.s32 16, 16
          %213 = vsyncadd [#allocation10], %s212
          %s215 = sshll.u32 [#allocation11], 4
          %s216 = int_to_ptr.vmem [resolvable:$true] %s215
          %218 = dma.hbm_to_vmem [thread:$0]  %s2, 16, %s216, [#allocation10]
        $region20: #{tpu_custom_call.1} parent=11 // pred_fallthru
          _
        // Predicated region
        $region21: #{tpu_custom_call.1} parent=11 // pred_check
          %p219 = pneg %p124
        $region22: #{tpu_custom_call.1} parent=11 // pred_check_branch
          %221 = sbr.rel (%p219) target = $region24
        $region23: #{tpu_custom_call.1} parent=11 // pred_region
          _
        $region24: #{tpu_custom_call.1} parent=11 // pred_fallthru
          _
      $region12: #{tpu_custom_call.1} parent=5 // pred_fallthru
        _
      %p222 = scmp.lt.s32.totalorder %s23, 2
      // Predicated region
      $region25: #{tpu_custom_call.1} parent=5 // pred_check
        %p223 = pneg %p222
      $region26: #{tpu_custom_call.1} parent=5 // pred_check_branch
        %225 = sbr.rel (%p223) target = $region28
      $region27: #{tpu_custom_call.1} parent=5 // pred_region
        // Predicated region
        $region29: #{tpu_custom_call.1} parent=27 // pred_check
          %p226 = pneg %p55
        $region30: #{tpu_custom_call.1} parent=27 // pred_check_branch
          %228 = sbr.rel (%p226) target = $region32
        $region31: #{tpu_custom_call.1} parent=27 // pred_region
          %s229 = sand.u32 %s45, 1
          %s230 = scalar_lea.sflag [#allocation7], %s229
          %s231 = sand.u32 %s45, 1
          %s232 = smul.addr %s231, 128
          %s233 = scalar_lea.vmem [#allocation6], %s232
          %s235 = ssub.s32 2048, 2048
          %236 = vsyncadd %s230, %s235
          %s237 = smul.addr %s30, 16
          %s238 = smul.addr %s237, 128
          %s239 = scalar_lea.hbm %s0, %s238
          %s240 = sshll.u32 %s233, 4
          %s241 = int_to_ptr.vmem [resolvable:$true] %s240
          %246 = dma.hbm_to_vmem [thread:$0]  %s239, 2048, %s241, %s230, 128, 128, 8
        $region32: #{tpu_custom_call.1} parent=27 // pred_fallthru
          _
      $region28: #{tpu_custom_call.1} parent=5 // pred_fallthru
        _
      %p247 = scmp.le.s32.totalorder 1, %s23
      %p248 = scmp.lt.s32.totalorder %s23, 3
      %p249 = pnand %p247, %p248
      %p250 = pneg %p249
      // Predicated region
      $region33: #{tpu_custom_call.1} parent=5 // pred_check
        _
      $region34: #{tpu_custom_call.1} parent=5 // pred_check_branch
        %252 = sbr.rel (%p249) target = $region36
      $region35: #{tpu_custom_call.1} parent=5 // pred_region
        %s253 = ssub.s32 %s23, 1
        %s254 = sand.u32 %s48, 1
        %s255 = scalar_lea.sflag [#allocation7], %s254
        %s256 = sand.u32 %s48, 1
        %s257 = smul.addr %s256, 128
        %s258 = scalar_lea.vmem [#allocation6], %s257
        // Predicated region
        $region37: #{tpu_custom_call.1} parent=35 // pred_check
          %p259 = pneg %p61
        $region38: #{tpu_custom_call.1} parent=35 // pred_check_branch
          %261 = sbr.rel (%p259) target = $region40
        $region39: #{tpu_custom_call.1} parent=35 // pred_region
          %262 = dma.done %s255, 2048
        $region40: #{tpu_custom_call.1} parent=35 // pred_fallthru
          _
        // Predicated region
        $region41: #{tpu_custom_call.1} parent=35 // pred_check
          %p263 = pneg %p82
        $region42: #{tpu_custom_call.1} parent=35 // pred_check_branch
          %265 = sbr.rel (%p263) target = $region44
        $region43: #{tpu_custom_call.1} parent=35 // pred_region
          %266 = dma.done [#allocation10], 256
        $region44: #{tpu_custom_call.1} parent=35 // pred_fallthru
          _
        // Predicated region
        $region45: #{tpu_custom_call.1} parent=35 // pred_check
          %p267 = pneg %p103
        $region46: #{tpu_custom_call.1} parent=35 // pred_check_branch
          %269 = sbr.rel (%p267) target = $region48
        $region47: #{tpu_custom_call.1} parent=35 // pred_region
          %270 = dma.done [#allocation10], 16
        $region48: #{tpu_custom_call.1} parent=35 // pred_fallthru
          _
        %s271 = sand.u32 %s48, 1
        %s272 = scalar_lea.sflag [#allocation7], %s271
        %s273 = sand.u32 %s48, 1
        %s274 = smul.addr %s273, 128
        %s275 = scalar_lea.vmem [#allocation6], %s274
        %p276 = pneg %p61
        %p277 = pneg %p58
        %p278 = pneg %p82
        %p279 = pneg %p79
        %p280 = pneg %p103
        %p281 = pneg %p100
        %p282 = pneg %p124
        %p283 = pneg %p121
        %p284 = pneg %p152
        %p285 = pneg %p149
        %s286 = sand.u32 %s139, 1
        %s287 = scalar_lea.sflag [#allocation8], %s286
        %s288 = sand.u32 %s139, 1
        %s289 = smul.addr %s288, 16
        %s290 = scalar_lea.vmem [#allocation12], %s289
        %p291 = pneg %p180
        %p292 = pneg %p177
        %s293 = sand.u32 %s167, 1
        %s294 = scalar_lea.sflag [#allocation14], %s293
        %s295 = sand.u32 %s167, 1
        %s296 = smul.addr %s295, 128
        %s297 = scalar_lea.vmem [#allocation13], %s296
        %s298 = smul.u32 16, %s33
        %p300 = scmp.eq.s32.totalorder %s33, 0
        // Predicated region
        $region49: #{tpu_custom_call.1} parent=35 // pred_check
          %p301 = pneg %p300
        $region50: #{tpu_custom_call.1} parent=35 // pred_check_branch
          %303 = sbr.rel (%p301) target = $region52
        $region51: #{tpu_custom_call.1} parent=35 // pred_region
          %v304 = vld [vmem:[%s258] sm:$0xff]
          %v305 = vld [vmem:[%s258 + $0x8] sm:$0xff]
          %v306 = vld [vmem:[%s258 + $0x10] sm:$0xff]
          %v307 = vld [vmem:[%s258 + $0x18] sm:$0xff]
          %v308 = vld [vmem:[%s258 + $0x20] sm:$0xff]
          %v309 = vld [vmem:[%s258 + $0x28] sm:$0xff]
          %v310 = vld [vmem:[%s258 + $0x30] sm:$0xff]
          %v311 = vld [vmem:[%s258 + $0x38] sm:$0xff]
          %v312 = vld [vmem:[%s258 + $0x40] sm:$0xff]
          %v313 = vld [vmem:[%s258 + $0x48] sm:$0xff]
          %v314 = vld [vmem:[%s258 + $0x50] sm:$0xff]
          %v315 = vld [vmem:[%s258 + $0x58] sm:$0xff]
          %v316 = vld [vmem:[%s258 + $0x60] sm:$0xff]
          %v317 = vld [vmem:[%s258 + $0x68] sm:$0xff]
          %v318 = vld [vmem:[%s258 + $0x70] sm:$0xff]
          %v319 = vld [vmem:[%s258 + $0x78] sm:$0xff]
          %v320 = vld [vmem:[#allocation9] sm:$0xff]
          %v321 = vld [vmem:[#allocation9 + $0x8] sm:$0xff]
          %v322 = vld [vmem:[#allocation11] sm:$0x1]
          %v324 = vlaneseq
          %v325 = vshrl.u32 %v324, 7
          %v326 = vsub.s32 0, %v325
          %v327 = vrot.slane %v322, %v326
          %vm329 = vcmask 130048
          %v331 = vsel %vm329, %v304, 0
          %v334 = vsel %vm329, %v305, 0
          %v337 = vsel %vm329, %v306, 0
          %v340 = vsel %vm329, %v307, 0
          %v343 = vsel %vm329, %v308, 0
          %v346 = vsel %vm329, %v309, 0
          %v349 = vsel %vm329, %v310, 0
          %v352 = vsel %vm329, %v311, 0
          %v355 = vsel %vm329, %v312, 0
          %v358 = vsel %vm329, %v313, 0
          %v361 = vsel %vm329, %v314, 0
          %v364 = vsel %vm329, %v315, 0
          %v367 = vsel %vm329, %v316, 0
          %v370 = vsel %vm329, %v317, 0
          %v373 = vsel %vm329, %v318, 0
          %v376 = vsel %vm329, %v319, 0
          %378 = vmatprep.subr.mxu0 0.0
          %379 = vmatpush1.msra.mxu0 %v320
          %380 = vmatprep.subr.mxu0 0.0
          %381 = vmatpush1.msra.mxu0 %v321
          %382 = vmatprep.subr.mxu0 0.0
          %383 = vmatpush1.msra.mxu0 0.0
          %384 = vmatprep.subr.mxu0 0.0
          %385 = vmatpush1.msra.mxu0 0.0
          %386 = vmatprep.subr.mxu0 0.0
          %387 = vmatpush1.msra.mxu0 0.0
          %388 = vmatprep.subr.mxu0 0.0
          %389 = vmatpush1.msra.mxu0 0.0
          %390 = vmatprep.subr.mxu0 0.0
          %391 = vmatpush1.msra.mxu0 0.0
          %392 = vmatprep.subr.mxu0 0.0
          %393 = vmatpush1.msra.mxu0 0.0
          %394 = vmatprep.subr.mxu0 0.0
          %395 = vmatpush1.msra.mxu0 0.0
          %396 = vmatprep.subr.mxu0 0.0
          %397 = vmatpush1.msra.mxu0 0.0
          %398 = vmatprep.subr.mxu0 0.0
          %399 = vmatpush1.msra.mxu0 0.0
          %400 = vmatprep.subr.mxu0 0.0
          %401 = vmatpush1.msra.mxu0 0.0
          %402 = vmatprep.subr.mxu0 0.0
          %403 = vmatpush1.msra.mxu0 0.0
          %404 = vmatprep.subr.mxu0 0.0
          %405 = vmatpush1.msra.mxu0 0.0
          %406 = vmatprep.subr.mxu0 0.0
          %407 = vmatpush1.msra.mxu0 0.0
          %408 = vmatprep.subr.mxu0 0.0
          %409 = vmatpush1.msra.mxu0 0.0
          %410 = vmatprep.subr.mxu0 0.0
          %411 = vmatpush1.msra.mxu0 0.0
          %412 = vmatprep.subr.mxu0 0.0
          %413 = vmatpush1.msra.mxu0 0.0
          %414 = vmatprep.subr.mxu0 0.0
          %415 = vmatpush1.msra.mxu0 0.0
          %416 = vmatprep.subr.mxu0 0.0
          %417 = vmatpush1.msra.mxu0 0.0
          %418 = vmatprep.subr.mxu0 0.0
          %419 = vmatpush1.msra.mxu0 0.0
          %420 = vmatprep.subr.mxu0 0.0
          %421 = vmatpush1.msra.mxu0 0.0
          %422 = vmatprep.subr.mxu0 0.0
          %423 = vmatpush1.msra.mxu0 0.0
          %424 = vmatprep.subr.mxu0 0.0
          %425 = vmatpush1.msra.mxu0 0.0
          %426 = vmatprep.subr.mxu0 0.0
          %427 = vmatpush1.msra.mxu0 0.0
          %428 = vmatprep.subr.mxu0 0.0
          %429 = vmatpush1.msra.mxu0 0.0
          %430 = vmatprep.subr.mxu0 0.0
          %431 = vmatpush1.msra.mxu0 0.0
          %432 = vmatprep.subr.mxu0 0.0
          %433 = vmatpush1.msra.mxu0 0.0
          %434 = vmatprep.subr.mxu0 0.0
          %435 = vmatpush1.msra.mxu0 0.0
          %436 = vmatprep.subr.mxu0 0.0
          %437 = vmatpush1.msra.mxu0 0.0
          %438 = vmatprep.subr.mxu0 0.0
          %439 = vmatpush1.msra.mxu0 0.0
          %440 = vmatprep.subr.mxu0 0.0
          %441 = vmatpush1.msra.mxu0 0.0
          %442 = vmatprep.mubr.f32.mxu0 0.0
          %443 = vmatmul.mubr.f32.gmra.mrb[0].mxu0 %v331
          %v444 = vpop.f32.mrb[0].mxu0
          %v445 = vadd.f32 %v327, %v444
          %v446 = vpop.f32.mrb[0].mxu0
          %447 = vmatprep.mubr.f32.mxu0 0.0
          %448 = vmatmul.mubr.f32.gmra.mrb[0].mxu0 %v334
          %v449 = vpop.f32.mrb[0].mxu0
          %v450 = vadd.f32 %v327, %v449
          %v451 = vpop.f32.mrb[0].mxu0
          %452 = vmatprep.mubr.f32.mxu0 0.0
          %453 = vmatmul.mubr.f32.gmra.mrb[0].mxu0 %v337
          %v454 = vpop.f32.mrb[0].mxu0
          %v455 = vadd.f32 %v327, %v454
          %v456 = vpop.f32.mrb[0].mxu0
          %457 = vmatprep.mubr.f32.mxu0 0.0
          %458 = vmatmul.mubr.f32.gmra.mrb[0].mxu0 %v340
          %v459 = vpop.f32.mrb[0].mxu0
          %v460 = vadd.f32 %v327, %v459
          %v461 = vpop.f32.mrb[0].mxu0
          %462 = vmatprep.mubr.f32.mxu0 0.0
          %463 = vmatmul.mubr.f32.gmra.mrb[0].mxu0 %v343
          %v464 = vpop.f32.mrb[0].mxu0
          %v465 = vadd.f32 %v327, %v464
          %v466 = vpop.f32.mrb[0].mxu0
          %467 = vmatprep.mubr.f32.mxu0 0.0
          %468 = vmatmul.mubr.f32.gmra.mrb[0].mxu0 %v346
          %v469 = vpop.f32.mrb[0].mxu0
          %v470 = vadd.f32 %v327, %v469
          %v471 = vpop.f32.mrb[0].mxu0
          %472 = vmatprep.mubr.f32.mxu0 0.0
          %473 = vmatmul.mubr.f32.gmra.mrb[0].mxu0 %v349
          %v474 = vpop.f32.mrb[0].mxu0
          %v475 = vadd.f32 %v327, %v474
          %v476 = vpop.f32.mrb[0].mxu0
          %477 = vmatprep.mubr.f32.mxu0 0.0
          %478 = vmatmul.mubr.f32.gmra.mrb[0].mxu0 %v352
          %v479 = vpop.f32.mrb[0].mxu0
          %v480 = vadd.f32 %v327, %v479
          %v481 = vpop.f32.mrb[0].mxu0
          %482 = vmatprep.mubr.f32.mxu0 0.0
          %483 = vmatmul.mubr.f32.gmra.mrb[0].mxu0 %v355
          %v484 = vpop.f32.mrb[0].mxu0
          %v485 = vadd.f32 %v327, %v484
          %v486 = vpop.f32.mrb[0].mxu0
          %487 = vmatprep.mubr.f32.mxu0 0.0
          %488 = vmatmul.mubr.f32.gmra.mrb[0].mxu0 %v358
          %v489 = vpop.f32.mrb[0].mxu0
          %v490 = vadd.f32 %v327, %v489
          %v491 = vpop.f32.mrb[0].mxu0
          %492 = vmatprep.mubr.f32.mxu0 0.0
          %493 = vmatmul.mubr.f32.gmra.mrb[0].mxu0 %v361
          %v494 = vpop.f32.mrb[0].mxu0
          %v495 = vadd.f32 %v327, %v494
          %v496 = vpop.f32.mrb[0].mxu0
          %497 = vmatprep.mubr.f32.mxu0 0.0
          %498 = vmatmul.mubr.f32.gmra.mrb[0].mxu0 %v364
          %v499 = vpop.f32.mrb[0].mxu0
          %v500 = vadd.f32 %v327, %v499
          %v501 = vpop.f32.mrb[0].mxu0
          %502 = vmatprep.mubr.f32.mxu0 0.0
          %503 = vmatmul.mubr.f32.gmra.mrb[0].mxu0 %v367
          %v504 = vpop.f32.mrb[0].mxu0
          %v505 = vadd.f32 %v327, %v504
          %v506 = vpop.f32.mrb[0].mxu0
          %507 = vmatprep.mubr.f32.mxu0 0.0
          %508 = vmatmul.mubr.f32.gmra.mrb[0].mxu0 %v370
          %v509 = vpop.f32.mrb[0].mxu0
          %v510 = vadd.f32 %v327, %v509
          %v511 = vpop.f32.mrb[0].mxu0
          %512 = vmatprep.mubr.f32.mxu0 0.0
          %513 = vmatmul.mubr.f32.gmra.mrb[0].mxu0 %v373
          %v514 = vpop.f32.mrb[0].mxu0
          %v515 = vadd.f32 %v327, %v514
          %v516 = vpop.f32.mrb[0].mxu0
          %517 = vmatprep.mubr.f32.mxu0 0.0
          %518 = vmatmul.mubr.f32.gmra.mrb[0].mxu0 %v376
          %v519 = vpop.f32.mrb[0].mxu0
          %v520 = vadd.f32 %v327, %v519
          %v521 = vpop.f32.mrb[0].mxu0
          %522 = vdwg.mxu0
          %v523 = vpack.c.bf16 %v450, %v445
          %v524 = vpack.c.bf16 %v460, %v455
          %v525 = vpack.c.bf16 %v470, %v465
          %v526 = vpack.c.bf16 %v480, %v475
          %v527 = vpack.c.bf16 %v490, %v485
          %v528 = vpack.c.bf16 %v500, %v495
          %v529 = vpack.c.bf16 %v510, %v505
          %v530 = vpack.c.bf16 %v520, %v515
          %vm531 = vcmask 64512
          %532 = vst.msk [vmem:[#allocation2] sm:$0xff] %vm531, %v523
          %533 = vst.msk [vmem:[#allocation2 + $0x8] sm:$0xff] %vm531, %v524
          %534 = vst.msk [vmem:[#allocation2 + $0x10] sm:$0xff] %vm531, %v525
          %535 = vst.msk [vmem:[#allocation2 + $0x18] sm:$0xff] %vm531, %v526
          %536 = vst.msk [vmem:[#allocation2 + $0x20] sm:$0xff] %vm531, %v527
          %537 = vst.msk [vmem:[#allocation2 + $0x28] sm:$0xff] %vm531, %v528
          %538 = vst.msk [vmem:[#allocation2 + $0x30] sm:$0xff] %vm531, %v529
          %539 = vst.msk [vmem:[#allocation2 + $0x38] sm:$0xff] %vm531, %v530
          %556 = vrot.lane.b32.xlu0 %v445, 120
          %v557 = vpop.permute.xlu0 %556
          %558 = vrot.lane.b32.xlu0 %v450, 120
          %v559 = vpop.permute.xlu0 %558
          %560 = vrot.lane.b32.xlu0 %v455, 120
          %v561 = vpop.permute.xlu0 %560
          %562 = vrot.lane.b32.xlu0 %v460, 120
          %v563 = vpop.permute.xlu0 %562
          %564 = vrot.lane.b32.xlu0 %v465, 120
          %v565 = vpop.permute.xlu0 %564
          %566 = vrot.lane.b32.xlu0 %v470, 120
          %v567 = vpop.permute.xlu0 %566
          %568 = vrot.lane.b32.xlu0 %v475, 120
          %v569 = vpop.permute.xlu0 %568
          %570 = vrot.lane.b32.xlu0 %v480, 120
          %v571 = vpop.permute.xlu0 %570
          %572 = vrot.lane.b32.xlu0 %v485, 120
          %v573 = vpop.permute.xlu0 %572
          %574 = vrot.lane.b32.xlu0 %v490, 120
          %v575 = vpop.permute.xlu0 %574
          %576 = vrot.lane.b32.xlu0 %v495, 120
          %v577 = vpop.permute.xlu0 %576
          %578 = vrot.lane.b32.xlu0 %v500, 120
          %v579 = vpop.permute.xlu0 %578
          %580 = vrot.lane.b32.xlu0 %v505, 120
          %v581 = vpop.permute.xlu0 %580
          %582 = vrot.lane.b32.xlu0 %v510, 120
          %v583 = vpop.permute.xlu0 %582
          %584 = vrot.lane.b32.xlu0 %v515, 120
          %v585 = vpop.permute.xlu0 %584
          %586 = vrot.lane.b32.xlu0 %v520, 120
          %v587 = vpop.permute.xlu0 %586
          %604 = vxpose.xlu0.b32.start [1/16] %v557, 128
          %605 = vxpose.xlu0.b32.cont [2/16] %v559, 128
          %606 = vxpose.xlu0.b32.cont [3/16] %v561, 128
          %607 = vxpose.xlu0.b32.cont [4/16] %v563, 128
          %608 = vxpose.xlu0.b32.cont [5/16] %v565, 128
          %609 = vxpose.xlu0.b32.cont [6/16] %v567, 128
          %610 = vxpose.xlu0.b32.cont [7/16] %v569, 128
          %611 = vxpose.xlu0.b32.cont [8/16] %v571, 128
          %612 = vxpose.xlu0.b32.cont [9/16] %v573, 128
          %613 = vxpose.xlu0.b32.cont [10/16] %v575, 128
          %614 = vxpose.xlu0.b32.cont [11/16] %v577, 128
          %615 = vxpose.xlu0.b32.cont [12/16] %v579, 128
          %616 = vxpose.xlu0.b32.cont [13/16] %v581, 128
          %617 = vxpose.xlu0.b32.cont [14/16] %v583, 128
          %618 = vxpose.xlu0.b32.cont [15/16] %v585, 128
          %619 = vxpose.xlu0.b32.end [16/16] %v587, 128
          %v620 = vpop.trf.xlu0
          %v621 = vpop.trf.xlu0
          %v622 = vpop.trf.xlu0
          %v623 = vpop.trf.xlu0
          %v624 = vpop.trf.xlu0
          %v625 = vpop.trf.xlu0
          %v626 = vpop.trf.xlu0
          %v627 = vpop.trf.xlu0
          %v628 = vpop.trf.xlu0
          %v629 = vpop.trf.xlu0
          %v630 = vpop.trf.xlu0
          %v631 = vpop.trf.xlu0
          %v632 = vpop.trf.xlu0
          %v633 = vpop.trf.xlu0
          %v634 = vpop.trf.xlu0
          %v635 = vpop.trf.xlu0
          %v636 = vpack.c.bf16 %v620, %v620
          %637 = vst [vmem:[#allocation3] sm:$0xf] %v636
          %646 = vrot.lane.b32.xlu0 %v523, 112
          %v647 = vpop.permute.xlu0 %646
          %648 = vrot.lane.b32.xlu0 %v524, 112
          %v649 = vpop.permute.xlu0 %648
          %650 = vrot.lane.b32.xlu0 %v525, 112
          %v651 = vpop.permute.xlu0 %650
          %652 = vrot.lane.b32.xlu0 %v526, 112
          %v653 = vpop.permute.xlu0 %652
          %654 = vrot.lane.b32.xlu0 %v527, 112
          %v655 = vpop.permute.xlu0 %654
          %656 = vrot.lane.b32.xlu0 %v528, 112
          %v657 = vpop.permute.xlu0 %656
          %658 = vrot.lane.b32.xlu0 %v529, 112
          %v659 = vpop.permute.xlu0 %658
          %660 = vrot.lane.b32.xlu0 %v530, 112
          %v661 = vpop.permute.xlu0 %660
          %670 = vst.msk [vmem:[#allocation4] sm:$0xff] %vm329, %v647
          %671 = vst.msk [vmem:[#allocation4 + $0x8] sm:$0xff] %vm329, %v649
          %672 = vst.msk [vmem:[#allocation4 + $0x10] sm:$0xff] %vm329, %v651
          %673 = vst.msk [vmem:[#allocation4 + $0x18] sm:$0xff] %vm329, %v653
          %674 = vst.msk [vmem:[#allocation4 + $0x20] sm:$0xff] %vm329, %v655
          %675 = vst.msk [vmem:[#allocation4 + $0x28] sm:$0xff] %vm329, %v657
          %676 = vst.msk [vmem:[#allocation4 + $0x30] sm:$0xff] %vm329, %v659
          %677 = vst.msk [vmem:[#allocation4 + $0x38] sm:$0xff] %vm329, %v661
        $region52: #{tpu_custom_call.1} parent=35 // pred_fallthru
          _
        %s678 = smul.u32 %s33, 128
        %s679 = sshra.s32 %s678, 4
        %s680 = sand.u32 %s678, 15
        %s681 = smul.addr %s679, 8
        %s682 = scalar_lea.vmem [#allocation2], %s681
        %v683 = vld [vmem:[%s682] sm:$0xff]
        %v684 = vld [vmem:[%s682 + $0x8] sm:$0xff]
        %v685 = vld [vmem:[%s682 + $0x10] sm:$0xff]
        %v686 = vld [vmem:[%s682 + $0x18] sm:$0xff]
        %v687 = vld [vmem:[%s682 + $0x20] sm:$0xff]
        %v688 = vld [vmem:[%s682 + $0x28] sm:$0xff]
        %v689 = vld [vmem:[%s682 + $0x30] sm:$0xff]
        %v690 = vld [vmem:[%s682 + $0x38] sm:$0xff]
        %v691 = vld [vmem:[#allocation3] sm:$0xf]
        %vm692 = vcmask 64512
        %v694 = vsel %vm692, %v683, 0
        %v697 = vsel %vm692, %v684, 0
        %v700 = vsel %vm692, %v685, 0
        %v703 = vsel %vm692, %v686, 0
        %v706 = vsel %vm692, %v687, 0
        %v709 = vsel %vm692, %v688, 0
        %v712 = vsel %vm692, %v689, 0
        %v715 = vsel %vm692, %v690, 0
        %vm717 = vcmask 1043456
        %v719 = vsel %vm717, %v691, 0
        %721 = vmatprep.subr.bf16.mxu0 0
        %722 = vmatpush1.bf16.msra.mxu0 %v719
        %723 = vmatprep.subr.bf16.mxu0 0
        %724 = vmatpush1.bf16.msra.mxu0 0
        %725 = vmatprep.subr.bf16.mxu0 0
        %726 = vmatpush1.bf16.msra.mxu0 0
        %727 = vmatprep.subr.bf16.mxu0 0
        %728 = vmatpush1.bf16.msra.mxu0 0
        %729 = vmatprep.subr.bf16.mxu0 0
        %730 = vmatpush1.bf16.msra.mxu0 0
        %731 = vmatprep.subr.bf16.mxu0 0
        %732 = vmatpush1.bf16.msra.mxu0 0
        %733 = vmatprep.subr.bf16.mxu0 0
        %734 = vmatpush1.bf16.msra.mxu0 0
        %735 = vmatprep.subr.bf16.mxu0 0
        %736 = vmatpush1.bf16.msra.mxu0 0
        %737 = vmatprep.subr.bf16.mxu0 0
        %738 = vmatpush1.bf16.msra.mxu0 0
        %739 = vmatprep.subr.bf16.mxu0 0
        %740 = vmatpush1.bf16.msra.mxu0 0
        %741 = vmatprep.subr.bf16.mxu0 0
        %742 = vmatpush1.bf16.msra.mxu0 0
        %743 = vmatprep.subr.bf16.mxu0 0
        %744 = vmatpush1.bf16.msra.mxu0 0
        %745 = vmatprep.subr.bf16.mxu0 0
        %746 = vmatpush1.bf16.msra.mxu0 0
        %747 = vmatprep.subr.bf16.mxu0 0
        %748 = vmatpush1.bf16.msra.mxu0 0
        %749 = vmatprep.subr.bf16.mxu0 0
        %750 = vmatpush1.bf16.msra.mxu0 0
        %751 = vmatprep.subr.bf16.mxu0 0
        %752 = vmatpush1.bf16.msra.mxu0 0
        %753 = vmatprep.mubr.bf16.mxu0 0
        %754 = vmatmul.mubr.bf16.gmra.mrb[0].mxu0 %v694
        %v755 = vpop.f32.mrb[0].mxu0
        %v756 = vadd.f32 0.0, %v755
        %v757 = vpop.f32.mrb[0].mxu0
        %v758 = vpop.f32.mrb[0].mxu0
        %v759 = vadd.f32 0.0, %v758
        %v760 = vpop.f32.mrb[0].mxu0
        %761 = vmatprep.mubr.bf16.mxu0 0
        %762 = vmatmul.mubr.bf16.gmra.mrb[0].mxu0 %v697
        %v763 = vpop.f32.mrb[0].mxu0
        %v764 = vadd.f32 0.0, %v763
        %v765 = vpop.f32.mrb[0].mxu0
        %v766 = vpop.f32.mrb[0].mxu0
        %v767 = vadd.f32 0.0, %v766
        %v768 = vpop.f32.mrb[0].mxu0
        %769 = vmatprep.mubr.bf16.mxu0 0
        %770 = vmatmul.mubr.bf16.gmra.mrb[0].mxu0 %v700
        %v771 = vpop.f32.mrb[0].mxu0
        %v772 = vadd.f32 0.0, %v771
        %v773 = vpop.f32.mrb[0].mxu0
        %v774 = vpop.f32.mrb[0].mxu0
        %v775 = vadd.f32 0.0, %v774
        %v776 = vpop.f32.mrb[0].mxu0
        %777 = vmatprep.mubr.bf16.mxu0 0
        %778 = vmatmul.mubr.bf16.gmra.mrb[0].mxu0 %v703
        %v779 = vpop.f32.mrb[0].mxu0
        %v780 = vadd.f32 0.0, %v779
        %v781 = vpop.f32.mrb[0].mxu0
        %v782 = vpop.f32.mrb[0].mxu0
        %v783 = vadd.f32 0.0, %v782
        %v784 = vpop.f32.mrb[0].mxu0
        %785 = vmatprep.mubr.bf16.mxu0 0
        %786 = vmatmul.mubr.bf16.gmra.mrb[0].mxu0 %v706
        %v787 = vpop.f32.mrb[0].mxu0
        %v788 = vadd.f32 0.0, %v787
        %v789 = vpop.f32.mrb[0].mxu0
        %v790 = vpop.f32.mrb[0].mxu0
        %v791 = vadd.f32 0.0, %v790
        %v792 = vpop.f32.mrb[0].mxu0
        %793 = vmatprep.mubr.bf16.mxu0 0
        %794 = vmatmul.mubr.bf16.gmra.mrb[0].mxu0 %v709
        %v795 = vpop.f32.mrb[0].mxu0
        %v796 = vadd.f32 0.0, %v795
        %v797 = vpop.f32.mrb[0].mxu0
        %v798 = vpop.f32.mrb[0].mxu0
        %v799 = vadd.f32 0.0, %v798
        %v800 = vpop.f32.mrb[0].mxu0
        %801 = vmatprep.mubr.bf16.mxu0 0
        %802 = vmatmul.mubr.bf16.gmra.mrb[0].mxu0 %v712
        %v803 = vpop.f32.mrb[0].mxu0
        %v804 = vadd.f32 0.0, %v803
        %v805 = vpop.f32.mrb[0].mxu0
        %v806 = vpop.f32.mrb[0].mxu0
        %v807 = vadd.f32 0.0, %v806
        %v808 = vpop.f32.mrb[0].mxu0
        %809 = vmatprep.mubr.bf16.mxu0 0
        %810 = vmatmul.mubr.bf16.gmra.mrb[0].mxu0 %v715
        %v811 = vpop.f32.mrb[0].mxu0
        %v812 = vadd.f32 0.0, %v811
        %v813 = vpop.f32.mrb[0].mxu0
        %v814 = vpop.f32.mrb[0].mxu0
        %v815 = vadd.f32 0.0, %v814
        %v816 = vpop.f32.mrb[0].mxu0
        %817 = vdwg.mxu0
        %v818 = vlaneseq
        %v819 = vand.u32 %v818, 127
        %vm820 = vcmp.lt.s32.totalorder %v819, 64
        %v821 = vsel %vm820, %v756, -1e+30
        %v822 = vsel %vm820, %v759, -1e+30
        %v823 = vsel %vm820, %v764, -1e+30
        %v824 = vsel %vm820, %v767, -1e+30
        %v825 = vsel %vm820, %v772, -1e+30
        %v826 = vsel %vm820, %v775, -1e+30
        %v827 = vsel %vm820, %v780, -1e+30
        %v828 = vsel %vm820, %v783, -1e+30
        %v829 = vsel %vm820, %v788, -1e+30
        %v830 = vsel %vm820, %v791, -1e+30
        %v831 = vsel %vm820, %v796, -1e+30
        %v832 = vsel %vm820, %v799, -1e+30
        %v833 = vsel %vm820, %v804, -1e+30
        %v834 = vsel %vm820, %v807, -1e+30
        %v835 = vsel %vm820, %v812, -1e+30
        %v836 = vsel %vm820, %v815, -1e+30
        %837 = vmax.xlane.f32.xlu0 %v821
        %v838 = vpop.xlane.xlu0 %837
        %839 = vmax.xlane.f32.xlu0 %v822
        %v840 = vpop.xlane.xlu0 %839
        %841 = vmax.xlane.f32.xlu0 %v823
        %v842 = vpop.xlane.xlu0 %841
        %843 = vmax.xlane.f32.xlu0 %v824
        %v844 = vpop.xlane.xlu0 %843
        %845 = vmax.xlane.f32.xlu0 %v825
        %v846 = vpop.xlane.xlu0 %845
        %847 = vmax.xlane.f32.xlu0 %v826
        %v848 = vpop.xlane.xlu0 %847
        %849 = vmax.xlane.f32.xlu0 %v827
        %v850 = vpop.xlane.xlu0 %849
        %851 = vmax.xlane.f32.xlu0 %v828
        %v852 = vpop.xlane.xlu0 %851
        %853 = vmax.xlane.f32.xlu0 %v829
        %v854 = vpop.xlane.xlu0 %853
        %855 = vmax.xlane.f32.xlu0 %v830
        %v856 = vpop.xlane.xlu0 %855
        %857 = vmax.xlane.f32.xlu0 %v831
        %v858 = vpop.xlane.xlu0 %857
        %859 = vmax.xlane.f32.xlu0 %v832
        %v860 = vpop.xlane.xlu0 %859
        %861 = vmax.xlane.f32.xlu0 %v833
        %v862 = vpop.xlane.xlu0 %861
        %863 = vmax.xlane.f32.xlu0 %v834
        %v864 = vpop.xlane.xlu0 %863
        %865 = vmax.xlane.f32.xlu0 %v835
        %v866 = vpop.xlane.xlu0 %865
        %867 = vmax.xlane.f32.xlu0 %v836
        %v868 = vpop.xlane.xlu0 %867
        %v869 = vsub.f32 %v821, %v838
        %v870 = vsub.f32 %v822, %v840
        %v871 = vsub.f32 %v823, %v842
        %v872 = vsub.f32 %v824, %v844
        %v873 = vsub.f32 %v825, %v846
        %v874 = vsub.f32 %v826, %v848
        %v875 = vsub.f32 %v827, %v850
        %v876 = vsub.f32 %v828, %v852
        %v877 = vsub.f32 %v829, %v854
        %v878 = vsub.f32 %v830, %v856
        %v879 = vsub.f32 %v831, %v858
        %v880 = vsub.f32 %v832, %v860
        %v881 = vsub.f32 %v833, %v862
        %v882 = vsub.f32 %v834, %v864
        %v883 = vsub.f32 %v835, %v866
        %v884 = vsub.f32 %v836, %v868
        %v885 = vmul.f32 %v869, 1.442695
        %v886 = vpow.pop %v885
        %v887 = vmul.f32 %v870, 1.442695
        %v888 = vpow.pop %v887
        %v889 = vmul.f32 %v871, 1.442695
        %v890 = vpow.pop %v889
        %v891 = vmul.f32 %v872, 1.442695
        %v892 = vpow.pop %v891
        %v893 = vmul.f32 %v873, 1.442695
        %v894 = vpow.pop %v893
        %v895 = vmul.f32 %v874, 1.442695
        %v896 = vpow.pop %v895
        %v897 = vmul.f32 %v875, 1.442695
        %v898 = vpow.pop %v897
        %v899 = vmul.f32 %v876, 1.442695
        %v900 = vpow.pop %v899
        %v901 = vmul.f32 %v877, 1.442695
        %v902 = vpow.pop %v901
        %v903 = vmul.f32 %v878, 1.442695
        %v904 = vpow.pop %v903
        %v905 = vmul.f32 %v879, 1.442695
        %v906 = vpow.pop %v905
        %v907 = vmul.f32 %v880, 1.442695
        %v908 = vpow.pop %v907
        %v909 = vmul.f32 %v881, 1.442695
        %v910 = vpow.pop %v909
        %v911 = vmul.f32 %v882, 1.442695
        %v912 = vpow.pop %v911
        %v913 = vmul.f32 %v883, 1.442695
        %v914 = vpow.pop %v913
        %v915 = vmul.f32 %v884, 1.442695
        %v916 = vpow.pop %v915
        %917 = vadd.xlane.f32.xlu0 %v886
        %v918 = vpop.xlane.xlu0 %917
        %919 = vadd.xlane.f32.xlu0 %v888
        %v920 = vpop.xlane.xlu0 %919
        %921 = vadd.xlane.f32.xlu0 %v890
        %v922 = vpop.xlane.xlu0 %921
        %923 = vadd.xlane.f32.xlu0 %v892
        %v924 = vpop.xlane.xlu0 %923
        %925 = vadd.xlane.f32.xlu0 %v894
        %v926 = vpop.xlane.xlu0 %925
        %927 = vadd.xlane.f32.xlu0 %v896
        %v928 = vpop.xlane.xlu0 %927
        %929 = vadd.xlane.f32.xlu0 %v898
        %v930 = vpop.xlane.xlu0 %929
        %931 = vadd.xlane.f32.xlu0 %v900
        %v932 = vpop.xlane.xlu0 %931
        %933 = vadd.xlane.f32.xlu0 %v902
        %v934 = vpop.xlane.xlu0 %933
        %935 = vadd.xlane.f32.xlu0 %v904
        %v936 = vpop.xlane.xlu0 %935
        %937 = vadd.xlane.f32.xlu0 %v906
        %v938 = vpop.xlane.xlu0 %937
        %939 = vadd.xlane.f32.xlu0 %v908
        %v940 = vpop.xlane.xlu0 %939
        %941 = vadd.xlane.f32.xlu0 %v910
        %v942 = vpop.xlane.xlu0 %941
        %943 = vadd.xlane.f32.xlu0 %v912
        %v944 = vpop.xlane.xlu0 %943
        %945 = vadd.xlane.f32.xlu0 %v914
        %v946 = vpop.xlane.xlu0 %945
        %947 = vadd.xlane.f32.xlu0 %v916
        %v948 = vpop.xlane.xlu0 %947
        %v949 = vrcp.pop %v918
        %v950 = vrcp.pop %v920
        %v951 = vrcp.pop %v922
        %v952 = vrcp.pop %v924
        %v953 = vrcp.pop %v926
        %v954 = vrcp.pop %v928
        %v955 = vrcp.pop %v930
        %v956 = vrcp.pop %v932
        %v957 = vrcp.pop %v934
        %v958 = vrcp.pop %v936
        %v959 = vrcp.pop %v938
        %v960 = vrcp.pop %v940
        %v961 = vrcp.pop %v942
        %v962 = vrcp.pop %v944
        %v963 = vrcp.pop %v946
        %v964 = vrcp.pop %v948
        %v965 = vmul.f32 %v886, %v949
        %v966 = vmul.f32 %v888, %v950
        %v967 = vmul.f32 %v890, %v951
        %v968 = vmul.f32 %v892, %v952
        %v969 = vmul.f32 %v894, %v953
        %v970 = vmul.f32 %v896, %v954
        %v971 = vmul.f32 %v898, %v955
        %v972 = vmul.f32 %v900, %v956
        %v973 = vmul.f32 %v902, %v957
        %v974 = vmul.f32 %v904, %v958
        %v975 = vmul.f32 %v906, %v959
        %v976 = vmul.f32 %v908, %v960
        %v977 = vmul.f32 %v910, %v961
        %v978 = vmul.f32 %v912, %v962
        %v979 = vmul.f32 %v914, %v963
        %v980 = vmul.f32 %v916, %v964
        %981 = vst [vmem:[%s297] sm:$0xff] %v965
        %982 = vst [vmem:[%s297 + $0x8] sm:$0xff] %v966
        %983 = vst [vmem:[%s297 + $0x10] sm:$0xff] %v967
        %984 = vst [vmem:[%s297 + $0x18] sm:$0xff] %v968
        %985 = vst [vmem:[%s297 + $0x20] sm:$0xff] %v969
        %986 = vst [vmem:[%s297 + $0x28] sm:$0xff] %v970
        %987 = vst [vmem:[%s297 + $0x30] sm:$0xff] %v971
        %988 = vst [vmem:[%s297 + $0x38] sm:$0xff] %v972
        %989 = vst [vmem:[%s297 + $0x40] sm:$0xff] %v973
        %990 = vst [vmem:[%s297 + $0x48] sm:$0xff] %v974
        %991 = vst [vmem:[%s297 + $0x50] sm:$0xff] %v975
        %992 = vst [vmem:[%s297 + $0x58] sm:$0xff] %v976
        %993 = vst [vmem:[%s297 + $0x60] sm:$0xff] %v977
        %994 = vst [vmem:[%s297 + $0x68] sm:$0xff] %v978
        %995 = vst [vmem:[%s297 + $0x70] sm:$0xff] %v979
        %996 = vst [vmem:[%s297 + $0x78] sm:$0xff] %v980
        %v997 = vpack.c.bf16 %v966, %v965
        %v998 = vpack.c.bf16 %v968, %v967
        %v999 = vpack.c.bf16 %v970, %v969
        %v1000 = vpack.c.bf16 %v972, %v971
        %v1001 = vpack.c.bf16 %v974, %v973
        %v1002 = vpack.c.bf16 %v976, %v975
        %v1003 = vpack.c.bf16 %v978, %v977
        %v1004 = vpack.c.bf16 %v980, %v979
        %v1005 = vld [vmem:[#allocation4] sm:$0xff]
        %v1006 = vld [vmem:[#allocation4 + $0x8] sm:$0xff]
        %v1007 = vld [vmem:[#allocation4 + $0x10] sm:$0xff]
        %v1008 = vld [vmem:[#allocation4 + $0x18] sm:$0xff]
        %v1009 = vld [vmem:[#allocation4 + $0x20] sm:$0xff]
        %v1010 = vld [vmem:[#allocation4 + $0x28] sm:$0xff]
        %v1011 = vld [vmem:[#allocation4 + $0x30] sm:$0xff]
        %v1012 = vld [vmem:[#allocation4 + $0x38] sm:$0xff]
        %1013 = vmatprep.subr.bf16.mxu0 0
        %1014 = vmatpush1.bf16.msra.mxu0 %v1005
        %1015 = vmatprep.subr.bf16.mxu0 0
        %1016 = vmatpush1.bf16.msra.mxu0 %v1006
        %1017 = vmatprep.subr.bf16.mxu0 0
        %1018 = vmatpush1.bf16.msra.mxu0 %v1007
        %1019 = vmatprep.subr.bf16.mxu0 0
        %1020 = vmatpush1.bf16.msra.mxu0 %v1008
        %1021 = vmatprep.subr.bf16.mxu0 0
        %1022 = vmatpush1.bf16.msra.mxu0 %v1009
        %1023 = vmatprep.subr.bf16.mxu0 0
        %1024 = vmatpush1.bf16.msra.mxu0 %v1010
        %1025 = vmatprep.subr.bf16.mxu0 0
        %1026 = vmatpush1.bf16.msra.mxu0 %v1011
        %1027 = vmatprep.subr.bf16.mxu0 0
        %1028 = vmatpush1.bf16.msra.mxu0 %v1012
        %1029 = vmatprep.subr.bf16.mxu0 0
        %1030 = vmatpush1.bf16.msra.mxu0 0
        %1031 = vmatprep.subr.bf16.mxu0 0
        %1032 = vmatpush1.bf16.msra.mxu0 0
        %1033 = vmatprep.subr.bf16.mxu0 0
        %1034 = vmatpush1.bf16.msra.mxu0 0
        %1035 = vmatprep.subr.bf16.mxu0 0
        %1036 = vmatpush1.bf16.msra.mxu0 0
        %1037 = vmatprep.subr.bf16.mxu0 0
        %1038 = vmatpush1.bf16.msra.mxu0 0
        %1039 = vmatprep.subr.bf16.mxu0 0
        %1040 = vmatpush1.bf16.msra.mxu0 0
        %1041 = vmatprep.subr.bf16.mxu0 0
        %1042 = vmatpush1.bf16.msra.mxu0 0
        %1043 = vmatprep.subr.bf16.mxu0 0
        %1044 = vmatpush1.bf16.msra.mxu0 0
        %1045 = vmatprep.mubr.bf16.mxu0 0
        %1046 = vmatmul.mubr.bf16.gmra.mrb[0].mxu0 %v997
        %v1047 = vpop.f32.mrb[0].mxu0
        %v1048 = vadd.f32 0.0, %v1047
        %v1049 = vpop.f32.mrb[0].mxu0
        %v1050 = vpop.f32.mrb[0].mxu0
        %v1051 = vadd.f32 0.0, %v1050
        %v1052 = vpop.f32.mrb[0].mxu0
        %1053 = vmatprep.mubr.bf16.mxu0 0
        %1054 = vmatmul.mubr.bf16.gmra.mrb[0].mxu0 %v998
        %v1055 = vpop.f32.mrb[0].mxu0
        %v1056 = vadd.f32 0.0, %v1055
        %v1057 = vpop.f32.mrb[0].mxu0
        %v1058 = vpop.f32.mrb[0].mxu0
        %v1059 = vadd.f32 0.0, %v1058
        %v1060 = vpop.f32.mrb[0].mxu0
        %1061 = vmatprep.mubr.bf16.mxu0 0
        %1062 = vmatmul.mubr.bf16.gmra.mrb[0].mxu0 %v999
        %v1063 = vpop.f32.mrb[0].mxu0
        %v1064 = vadd.f32 0.0, %v1063
        %v1065 = vpop.f32.mrb[0].mxu0
        %v1066 = vpop.f32.mrb[0].mxu0
        %v1067 = vadd.f32 0.0, %v1066
        %v1068 = vpop.f32.mrb[0].mxu0
        %1069 = vmatprep.mubr.bf16.mxu0 0
        %1070 = vmatmul.mubr.bf16.gmra.mrb[0].mxu0 %v1000
        %v1071 = vpop.f32.mrb[0].mxu0
        %v1072 = vadd.f32 0.0, %v1071
        %v1073 = vpop.f32.mrb[0].mxu0
        %v1074 = vpop.f32.mrb[0].mxu0
        %v1075 = vadd.f32 0.0, %v1074
        %v1076 = vpop.f32.mrb[0].mxu0
        %1077 = vmatprep.mubr.bf16.mxu0 0
        %1078 = vmatmul.mubr.bf16.gmra.mrb[0].mxu0 %v1001
        %v1079 = vpop.f32.mrb[0].mxu0
        %v1080 = vadd.f32 0.0, %v1079
        %v1081 = vpop.f32.mrb[0].mxu0
        %v1082 = vpop.f32.mrb[0].mxu0
        %v1083 = vadd.f32 0.0, %v1082
        %v1084 = vpop.f32.mrb[0].mxu0
        %1085 = vmatprep.mubr.bf16.mxu0 0
        %1086 = vmatmul.mubr.bf16.gmra.mrb[0].mxu0 %v1002
        %v1087 = vpop.f32.mrb[0].mxu0
        %v1088 = vadd.f32 0.0, %v1087
        %v1089 = vpop.f32.mrb[0].mxu0
        %v1090 = vpop.f32.mrb[0].mxu0
        %v1091 = vadd.f32 0.0, %v1090
        %v1092 = vpop.f32.mrb[0].mxu0
        %1093 = vmatprep.mubr.bf16.mxu0 0
        %1094 = vmatmul.mubr.bf16.gmra.mrb[0].mxu0 %v1003
        %v1095 = vpop.f32.mrb[0].mxu0
        %v1096 = vadd.f32 0.0, %v1095
        %v1097 = vpop.f32.mrb[0].mxu0
        %v1098 = vpop.f32.mrb[0].mxu0
        %v1099 = vadd.f32 0.0, %v1098
        %v1100 = vpop.f32.mrb[0].mxu0
        %1101 = vmatprep.mubr.bf16.mxu0 0
        %1102 = vmatmul.mubr.bf16.gmra.mrb[0].mxu0 %v1004
        %v1103 = vpop.f32.mrb[0].mxu0
        %v1104 = vadd.f32 0.0, %v1103
        %v1105 = vpop.f32.mrb[0].mxu0
        %v1106 = vpop.f32.mrb[0].mxu0
        %v1107 = vadd.f32 0.0, %v1106
        %v1108 = vpop.f32.mrb[0].mxu0
        %1109 = vdwg.mxu0
        %s1110 = scalar_lea.vmem %s258, %s678 [#allocation6]
        %v1111 = vld [vmem:[%s1110] sm:$0xff]
        %v1112 = vld [vmem:[%s1110 + $0x8] sm:$0xff]
        %v1113 = vld [vmem:[%s1110 + $0x10] sm:$0xff]
        %v1114 = vld [vmem:[%s1110 + $0x18] sm:$0xff]
        %v1115 = vld [vmem:[%s1110 + $0x20] sm:$0xff]
        %v1116 = vld [vmem:[%s1110 + $0x28] sm:$0xff]
        %v1117 = vld [vmem:[%s1110 + $0x30] sm:$0xff]
        %v1118 = vld [vmem:[%s1110 + $0x38] sm:$0xff]
        %v1119 = vld [vmem:[%s1110 + $0x40] sm:$0xff]
        %v1120 = vld [vmem:[%s1110 + $0x48] sm:$0xff]
        %v1121 = vld [vmem:[%s1110 + $0x50] sm:$0xff]
        %v1122 = vld [vmem:[%s1110 + $0x58] sm:$0xff]
        %v1123 = vld [vmem:[%s1110 + $0x60] sm:$0xff]
        %v1124 = vld [vmem:[%s1110 + $0x68] sm:$0xff]
        %v1125 = vld [vmem:[%s1110 + $0x70] sm:$0xff]
        %v1126 = vld [vmem:[%s1110 + $0x78] sm:$0xff]
        %s1127 = sld [smem:[#allocation5]]
        %v1128 = vstv %s1127
        %v1129 = vmul.f32 %v1128, %v1048
        %v1130 = vmul.f32 %v1128, %v1051
        %v1131 = vmul.f32 %v1128, %v1056
        %v1132 = vmul.f32 %v1128, %v1059
        %v1133 = vmul.f32 %v1128, %v1064
        %v1134 = vmul.f32 %v1128, %v1067
        %v1135 = vmul.f32 %v1128, %v1072
        %v1136 = vmul.f32 %v1128, %v1075
        %v1137 = vmul.f32 %v1128, %v1080
        %v1138 = vmul.f32 %v1128, %v1083
        %v1139 = vmul.f32 %v1128, %v1088
        %v1140 = vmul.f32 %v1128, %v1091
        %v1141 = vmul.f32 %v1128, %v1096
        %v1142 = vmul.f32 %v1128, %v1099
        %v1143 = vmul.f32 %v1128, %v1104
        %v1144 = vmul.f32 %v1128, %v1107
        %v1145 = vadd.f32 %v1129, %v1111
        %v1146 = vadd.f32 %v1130, %v1112
        %v1147 = vadd.f32 %v1131, %v1113
        %v1148 = vadd.f32 %v1132, %v1114
        %v1149 = vadd.f32 %v1133, %v1115
        %v1150 = vadd.f32 %v1134, %v1116
        %v1151 = vadd.f32 %v1135, %v1117
        %v1152 = vadd.f32 %v1136, %v1118
        %v1153 = vadd.f32 %v1137, %v1119
        %v1154 = vadd.f32 %v1138, %v1120
        %v1155 = vadd.f32 %v1139, %v1121
        %v1156 = vadd.f32 %v1140, %v1122
        %v1157 = vadd.f32 %v1141, %v1123
        %v1158 = vadd.f32 %v1142, %v1124
        %v1159 = vadd.f32 %v1143, %v1125
        %v1160 = vadd.f32 %v1144, %v1126
        %1161 = vxpose.xlu0.b32.start [1/16] %v1145, 128
        %1162 = vxpose.xlu0.b32.cont [2/16] %v1146, 128
        %1163 = vxpose.xlu0.b32.cont [3/16] %v1147, 128
        %1164 = vxpose.xlu0.b32.cont [4/16] %v1148, 128
        %1165 = vxpose.xlu0.b32.cont [5/16] %v1149, 128
        %1166 = vxpose.xlu0.b32.cont [6/16] %v1150, 128
        %1167 = vxpose.xlu0.b32.cont [7/16] %v1151, 128
        %1168 = vxpose.xlu0.b32.cont [8/16] %v1152, 128
        %1169 = vxpose.xlu0.b32.cont [9/16] %v1153, 128
        %1170 = vxpose.xlu0.b32.cont [10/16] %v1154, 128
        %1171 = vxpose.xlu0.b32.cont [11/16] %v1155, 128
        %1172 = vxpose.xlu0.b32.cont [12/16] %v1156, 128
        %1173 = vxpose.xlu0.b32.cont [13/16] %v1157, 128
        %1174 = vxpose.xlu0.b32.cont [14/16] %v1158, 128
        %1175 = vxpose.xlu0.b32.cont [15/16] %v1159, 128
        %1176 = vxpose.xlu0.b32.end [16/16] %v1160, 128
        %v1177 = vpop.trf.xlu0
        %v1178 = vpop.trf.xlu0
        %v1179 = vpop.trf.xlu0
        %v1180 = vpop.trf.xlu0
        %v1181 = vpop.trf.xlu0
        %v1182 = vpop.trf.xlu0
        %v1183 = vpop.trf.xlu0
        %v1184 = vpop.trf.xlu0
        %v1185 = vpop.trf.xlu0
        %v1186 = vpop.trf.xlu0
        %v1187 = vpop.trf.xlu0
        %v1188 = vpop.trf.xlu0
        %v1189 = vpop.trf.xlu0
        %v1190 = vpop.trf.xlu0
        %v1191 = vpop.trf.xlu0
        %v1192 = vpop.trf.xlu0
        %1193 = vst [vmem:[%s290] sm:$0xff] %v1177
        %1194 = vst [vmem:[%s290 + $0x8] sm:$0xff] %v1178
        %s1195 = sand.u32 %s139, 1
        %s1196 = scalar_lea.sflag [#allocation8], %s1195
        %s1197 = sand.u32 %s139, 1
        %s1198 = smul.addr %s1197, 16
        %s1199 = scalar_lea.vmem [#allocation12], %s1198
        %s1200 = sand.u32 %s167, 1
        %s1201 = scalar_lea.sflag [#allocation14], %s1200
        %s1202 = sand.u32 %s167, 1
        %s1203 = smul.addr %s1202, 128
        %s1204 = scalar_lea.vmem [#allocation13], %s1203
        // Predicated region
        $region53: #{tpu_custom_call.1} parent=35 // pred_check
          %p1205 = pneg %p149
        $region54: #{tpu_custom_call.1} parent=35 // pred_check_branch
          %1207 = sbr.rel (%p1205) target = $region56
        $region55: #{tpu_custom_call.1} parent=35 // pred_region
          %s1209 = ssub.s32 256, 256
          %1210 = vsyncadd %s1196, %s1209
          %s1211 = smul.addr %s32, 2
          %s1212 = sadd.s32 %s33, %s1211
          %s1213 = smul.addr %s1212, 128
          %s1214 = scalar_lea.hbm %s4, %s1213
          %s1215 = sshll.u32 %s1199, 4
          %s1216 = int_to_ptr.vmem [resolvable:$true] %s1215
          %1221 = dma.vmem_to_hbm [thread:$0]  %s1216, 256, %s1214, %s1196, 128, 128, 8
        $region56: #{tpu_custom_call.1} parent=35 // pred_fallthru
          _
        // Predicated region
        $region57: #{tpu_custom_call.1} parent=35 // pred_check
          %p1222 = pneg %p177
        $region58: #{tpu_custom_call.1} parent=35 // pred_check_branch
          %1224 = sbr.rel (%p1222) target = $region60
        $region59: #{tpu_custom_call.1} parent=35 // pred_region
          %s1225 = smul.u32 16, %s33
          %s1227 = ssub.s32 2048, 2048
          %1228 = vsyncadd %s1201, %s1227
          %s1229 = smul.addr %s32, 16
          %s1230 = sadd.s32 %s1225, %s1229
          %s1231 = smul.addr %s1230, 128
          %s1232 = scalar_lea.hbm %s5, %s1231
          %s1233 = sshll.u32 %s1204, 4
          %s1234 = int_to_ptr.vmem [resolvable:$true] %s1233
          %1239 = dma.vmem_to_hbm [thread:$0]  %s1234, 2048, %s1232, %s1201, 128, 128, 8
        $region60: #{tpu_custom_call.1} parent=35 // pred_fallthru
          _
      $region36: #{tpu_custom_call.1} parent=5 // pred_fallthru
        _
      %p1240 = scmp.le.s32.totalorder 2, %s23
      // Predicated region
      $region61: #{tpu_custom_call.1} parent=5 // pred_check
        %p1241 = pneg %p1240
      $region62: #{tpu_custom_call.1} parent=5 // pred_check_branch
        %1243 = sbr.rel (%p1241) target = $region64
      $region63: #{tpu_custom_call.1} parent=5 // pred_region
        %s1244 = ssub.s32 %s23, 2
        // Predicated region
        $region65: #{tpu_custom_call.1} parent=63 // pred_check
          %p1245 = pneg %p155
        $region66: #{tpu_custom_call.1} parent=63 // pred_check_branch
          %1247 = sbr.rel (%p1245) target = $region68
        $region67: #{tpu_custom_call.1} parent=63 // pred_region
          %s1248 = sand.u32 %s140, 1
          %s1249 = scalar_lea.sflag [#allocation8], %s1248
          %s1250 = sand.u32 %s140, 1
          %s1251 = smul.addr %s1250, 16
          %s1252 = scalar_lea.vmem [#allocation12], %s1251
          %1253 = dma.done %s1249, 256
        $region68: #{tpu_custom_call.1} parent=63 // pred_fallthru
          _
        // Predicated region
        $region69: #{tpu_custom_call.1} parent=63 // pred_check
          %p1254 = pneg %p183
        $region70: #{tpu_custom_call.1} parent=63 // pred_check_branch
          %1256 = sbr.rel (%p1254) target = $region72
        $region71: #{tpu_custom_call.1} parent=63 // pred_region
          %s1257 = sand.u32 %s168, 1
          %s1258 = scalar_lea.sflag [#allocation14], %s1257
          %s1259 = sand.u32 %s168, 1
          %s1260 = smul.addr %s1259, 128
          %s1261 = scalar_lea.vmem [#allocation13], %s1260
          %1262 = dma.done %s1258, 2048
        $region72: #{tpu_custom_call.1} parent=63 // pred_fallthru
          _
      $region64: #{tpu_custom_call.1} parent=5 // pred_fallthru
        _
    $region6: #{tpu_custom_call.1} parent=1 // loop_footer
      %s27 = sadd.s32 1, %s23
    $region7: #{tpu_custom_call.1} parent=1 // loop_footer_branch
      %22 = sbr.rel target = $region3
    $region8: #{tpu_custom_call.1} parent=1 // loop_exit
      _
    %1263 = vsyncpa [#allocation7], 1
    %s1264 = scalar_lea.sflag [#allocation7], 1
    %1265 = vsyncpa %s1264, 1
    %1266 = vsyncpa [#allocation10], 1
    %1267 = vsyncpa [#allocation8], 1
    %s1268 = scalar_lea.sflag [#allocation8], 1
    %1269 = vsyncpa %s1268, 1
    %1270 = vsyncpa [#allocation14], 1
    %s1271 = scalar_lea.sflag [#allocation14], 1
    %1272 = vsyncpa %s1271, 1

</llo_original>
